<compile_context>
chip_gen: v6e
topology: v6e:2x2x1
jax: 0.10.0
libtpu: 0.0.40
codegen_flags: <defaults>
</compile_context>

<pallas_src>
import functools

import jax
import jax.numpy as jnp
from jax import lax
from jax.experimental import pallas as pl
from jax.experimental.pallas import tpu as pltpu

_LANES = 128
_SUBLANES = 8
_TILE = _SUBLANES * _LANES              # 1024
_ROW_ALIGN = 32                         # int8 native sublane tiling (covers bf16/f32 too)
_MAX_BLOCK_ROWS = 8192                  # hard cap (per-step latency sanity)
_INPUT_VMEM_BUDGET = 9 * 1024 * 1024    # 3 inputs x 2 pipeline buffers target


def _round_up(x, k):
    return ((x + k - 1) // k) * k


def _num_partials():
    """2 reduction partials only on chips with 2 TensorCores; else 1."""
    try:
        kind = jax.devices()[0].device_kind.lower()
    except Exception:
        return 1
    return 2 if any(m in kind for m in ("v4", "v5p", "v7")) else 1


def _masked_mse_kernel(p_ref, t_ref, m_ref, num_ref, den_ref,
                       num_acc, den_acc, *,
                       block_rows, blocks_per_partial, total_rows):
    pi = pl.program_id(0)       # "parallel" partial axis (TensorCore split)
    j = pl.program_id(1)        # "arbitrary" reduction axis
    nj = pl.num_programs(1)

    @pl.when(j == 0)
    def _():
        num_acc[...] = jnp.zeros_like(num_acc)
        den_acc[...] = jnp.zeros_like(den_acc)

    # Cast in-kernel (VPU work hidden under the DMA); inputs stay narrow in HBM.
    p = p_ref[...].astype(jnp.float32)
    t = t_ref[...].astype(jnp.float32)
    m = m_ref[...].astype(jnp.float32)
    d = p - t
    sq = d * d * m

    def _accumulate(num_tile, den_tile):
        # (block_rows,128) -> (block_rows/8, 8, 128) matches the native
        # (8,128) vreg tiling (free reshape); sum(axis=0) is pure vreg-wise
        # VALU adds into the tiny (8,128) accumulators (no block-sized
        # accumulator load/store, no cross-lane reduce in the hot loop).
        num_acc[...] += num_tile.reshape(-1, _SUBLANES, _LANES).sum(axis=0)
        den_acc[...] += den_tile.reshape(-1, _SUBLANES, _LANES).sum(axis=0)

    blk = pi * blocks_per_partial + j           # unclamped global block index
    needs_mask = (blk + 1) * block_rows > total_rows

    # Fast path: the whole block is real data -> no iota/compare/select work.
    @pl.when(jnp.logical_not(needs_mask))
    def _():
        _accumulate(sq, m)

    # Slow path (ragged tail block or clamped duplicate block): discard rows
    # past the real array with jnp.where (NOT a multiply -- OOB garbage may be
    # NaN/Inf and must never touch the sums).
    @pl.when(needs_mask)
    def _():
        row_ids = blk * block_rows + lax.broadcasted_iota(
            jnp.int32, (block_rows, _LANES), 0)
        valid = row_ids < total_rows
        _accumulate(jnp.where(valid, sq, 0.0), jnp.where(valid, m, 0.0))

    @pl.when(j == nj - 1)
    def _():
        num_ref[...] = num_acc[...]
        den_ref[...] = den_acc[...]


def masked_mse_loss(preds, targets, mask):
    """Pallas implementation of MaskedMSELoss.forward. Returns a scalar.

    Note: an all-zero mask yields NaN/Inf, exactly like the PyTorch formula.
    """
    assert preds.shape == targets.shape == mask.shape

    # Keep native dtypes; casts happen in-kernel so HBM traffic stays narrow.
    p = preds.reshape(-1)
    t = targets.reshape(-1)
    m = mask.reshape(-1)
    if m.dtype == jnp.bool_:
        m = m.astype(jnp.int8)   # same byte width; lowering-safety only
    n = p.shape[0]

    # TODO(synk): when numel % 1024 != 0, handle the ragged tail in-kernel
    # (element-validity mask on a 1D/ANY-space view) instead of this
    # host-side pad copy; rare for NN tensors and never hit by the demo.
    n_pad = _round_up(n, _TILE)
    pad = n_pad - n
    if pad:
        p = jnp.pad(p, (0, pad))     # zero pad -> contributes 0 to num & den
        t = jnp.pad(t, (0, pad))
        m = jnp.pad(m, (0, pad))

    rows = n_pad // _LANES                      # multiple of 8
    p2 = p.reshape(rows, _LANES)                # free reshape when pad == 0
    t2 = t.reshape(rows, _LANES)
    m2 = m.reshape(rows, _LANES)

    P = _num_partials()

    # Block sizing: as big as possible while 3 inputs x 2 pipeline buffers
    # stay within ~9 MiB (headroom for elementwise temporaries under the
    # 32 MiB scoped-VMEM cap requested below; safe on v5e/v6e/v7x alike).
    bytes_per_row = 2 * _LANES * (p2.dtype.itemsize + t2.dtype.itemsize
                                  + m2.dtype.itemsize)
    cap_rows = max(_ROW_ALIGN,
                   (_INPUT_VMEM_BUDGET // bytes_per_row) // _ROW_ALIGN * _ROW_ALIGN)
    cap_rows = min(cap_rows, _MAX_BLOCK_ROWS)

    if rows <= cap_rows and (P == 1 or rows < 2 * _ROW_ALIGN):
        # Whole array as one block (full-dim blocks are always layout-legal).
        P = 1
        block_rows = rows
        num_blocks = 1
    else:
        block_rows = min(cap_rows, _round_up(pl.cdiv(rows, P), _ROW_ALIGN))
        num_blocks = pl.cdiv(rows, block_rows)
        if P > 1 and num_blocks % P:
            # Split blocks evenly across TensorCores so no core burns a DMA
            # on a fully-masked duplicate block.
            adj = _round_up(pl.cdiv(rows, _round_up(num_blocks, P)), _ROW_ALIGN)
            block_rows = min(adj, cap_rows)
            num_blocks = pl.cdiv(rows, block_rows)
    blocks_per_partial = pl.cdiv(num_blocks, P)

    def in_map(pi, j):
        blk = pi * blocks_per_partial + j
        # Never let a window *start* out of bounds; duplicate reads are
        # discarded by the in-kernel validity mask.
        return (jnp.minimum(blk, num_blocks - 1), 0)

    in_spec = pl.BlockSpec((block_rows, _LANES), in_map)
    out_spec = pl.BlockSpec((_SUBLANES, _LANES), lambda pi, j: (pi, 0))

    kernel = functools.partial(
        _masked_mse_kernel,
        block_rows=block_rows,
        blocks_per_partial=blocks_per_partial,
        total_rows=rows,
    )

    in_bytes = (p2.size * p2.dtype.itemsize + t2.size * t2.dtype.itemsize
                + m2.size * m2.dtype.itemsize)
    out_bytes = 2 * P * _SUBLANES * _LANES * 4
    cost = pl.CostEstimate(flops=5 * int(n_pad), transcendentals=0,
                           bytes_accessed=int(in_bytes + out_bytes))

    num_p, den_p = pl.pallas_call(
        kernel,
        out_shape=(
            jax.ShapeDtypeStruct((P * _SUBLANES, _LANES), jnp.float32),
            jax.ShapeDtypeStruct((P * _SUBLANES, _LANES), jnp.float32),
        ),
        grid_spec=pltpu.PrefetchScalarGridSpec(
            num_scalar_prefetch=0,
            grid=(P, blocks_per_partial),
            in_specs=[in_spec, in_spec, in_spec],
            out_specs=(out_spec, out_spec),
            scratch_shapes=[
                pltpu.VMEM((_SUBLANES, _LANES), jnp.float32),  # num accumulator
                pltpu.VMEM((_SUBLANES, _LANES), jnp.float32),  # den accumulator
            ],
        ),
        compiler_params=pltpu.CompilerParams(
            dimension_semantics=("parallel", "arbitrary"),
            vmem_limit_bytes=32 * 1024 * 1024,
        ),
        cost_estimate=cost,
    )(p2, t2, m2)

    # Tiny final combine (P*8*128 elements each) + divide in plain JAX.
    return jnp.sum(num_p) / jnp.sum(den_p)


if __name__ == "__main__":
    key = jax.random.PRNGKey(0)
    k1, k2, k3 = jax.random.split(key, 3)

    shape = (2, 4, 16, 16)  # NCHW
    preds = jax.random.normal(k1, shape, dtype=jnp.float32)
    targets = jax.random.normal(k2, shape, dtype=jnp.float32)
    # Mask stays narrow (int8) end-to-end; the kernel casts on-chip.
    mask = (jax.random.uniform(k3, shape) > 0.5).astype(jnp.int8)

    loss = masked_mse_loss(preds, targets, mask)
    jax.block_until_ready(loss)

    # Reference check (pure JAX)
    mask_f = mask.astype(jnp.float32)
    ref = jnp.sum((preds - targets) ** 2 * mask_f) / jnp.sum(mask_f)
    assert jnp.allclose(loss, ref, rtol=1e-5, atol=1e-5), (loss, ref)

    print("KERNEL_OK")
</pallas_src>

<mosaic_0001>
module attributes {stable_mosaic.version = 11 : i64} {
  func.func @_masked_mse_kernel(%arg0: i32, %arg1: i32, %arg2: memref<16x128xf32, #tpu.memory_space<vmem>>, %arg3: memref<16x128xf32, #tpu.memory_space<vmem>>, %arg4: memref<16x128xi8, #tpu.memory_space<vmem>>, %arg5: memref<8x128xf32, #tpu.memory_space<vmem>>, %arg6: memref<8x128xf32, #tpu.memory_space<vmem>>, %arg7: memref<8x128xf32, #tpu.memory_space<vmem>>, %arg8: memref<8x128xf32, #tpu.memory_space<vmem>>) attributes {dimension_semantics = [#tpu.dimension_semantics<parallel>, #tpu.dimension_semantics<arbitrary>], iteration_bounds = array<i64: 1, 1>, scalar_prefetch = 0 : i64, scratch_operands = 2 : i64, tpu.core_type = #tpu.core_type<tc>, window_params = [{transform_indices = @transform_0, window_bounds = array<i64: 16, 128>}, {transform_indices = @transform_1, window_bounds = array<i64: 16, 128>}, {transform_indices = @transform_2, window_bounds = array<i64: 16, 128>}, {transform_indices = @transform_3, window_bounds = array<i64: 8, 128>}, {transform_indices = @transform_4, window_bounds = array<i64: 8, 128>}]} {
    %c0_i32 = arith.constant 0 : i32
    %0 = arith.cmpi eq, %arg1, %c0_i32 : i32
    %1 = arith.extui %0 : i1 to i32
    %c0_i32_0 = arith.constant 0 : i32
    %2 = arith.cmpi ne, %1, %c0_i32_0 : i32
    scf.if %2 {
      %cst = arith.constant 0.000000e+00 : f32
      %23 = vector.broadcast %cst : f32 to vector<8x128xf32>
      %c0_12 = arith.constant 0 : index
      %c0_13 = arith.constant 0 : index
      %24 = vector.load %arg7[%c0_12, %c0_13] : memref<8x128xf32, #tpu.memory_space<vmem>>, vector<8x128xf32>
      tpu.vector_store %arg7[%c0_12, %c0_13], %23 {strides = array<i32>} : memref<8x128xf32, #tpu.memory_space<vmem>>, vector<8x128xf32>,
      %cst_14 = arith.constant 0.000000e+00 : f32
      %25 = vector.broadcast %cst_14 : f32 to vector<8x128xf32>
      %c0_15 = arith.constant 0 : index
      %c0_16 = arith.constant 0 : index
      %26 = vector.load %arg8[%c0_15, %c0_16] : memref<8x128xf32, #tpu.memory_space<vmem>>, vector<8x128xf32>
      tpu.vector_store %arg8[%c0_15, %c0_16], %25 {strides = array<i32>} : memref<8x128xf32, #tpu.memory_space<vmem>>, vector<8x128xf32>,
    } else {
    }
    %c0 = arith.constant 0 : index
    %c0_1 = arith.constant 0 : index
    %3 = vector.load %arg2[%c0, %c0_1] : memref<16x128xf32, #tpu.memory_space<vmem>>, vector<16x128xf32>
    %c0_2 = arith.constant 0 : index
    %c0_3 = arith.constant 0 : index
    %4 = vector.load %arg3[%c0_2, %c0_3] : memref<16x128xf32, #tpu.memory_space<vmem>>, vector<16x128xf32>
    %c0_4 = arith.constant 0 : index
    %c0_5 = arith.constant 0 : index
    %5 = vector.load %arg4[%c0_4, %c0_5] : memref<16x128xi8, #tpu.memory_space<vmem>>, vector<16x128xi8>
    %6 = arith.sitofp %5 : vector<16x128xi8> to vector<16x128xf32>
    %7 = arith.subf %3, %4 : vector<16x128xf32>
    %8 = arith.mulf %7, %7 : vector<16x128xf32>
    %9 = arith.mulf %8, %6 : vector<16x128xf32>
    %c1_i32 = arith.constant 1 : i32
    %10 = arith.muli %arg0, %c1_i32 : i32
    %11 = arith.addi %10, %arg1 : i32
    %c1_i32_6 = arith.constant 1 : i32
    %12 = arith.addi %11, %c1_i32_6 : i32
    %c16_i32 = arith.constant 16 : i32
    %13 = arith.muli %12, %c16_i32 : i32
    %c16_i32_7 = arith.constant 16 : i32
    %14 = arith.cmpi sgt, %13, %c16_i32_7 : i32
    %true = arith.constant true
    %15 = arith.xori %14, %true : i1
    %16 = arith.extui %15 : i1 to i32
    %c0_i32_8 = arith.constant 0 : i32
    %17 = arith.cmpi ne, %16, %c0_i32_8 : i32
    scf.if %17 {
      %c0_12 = arith.constant 0 : index
      %c0_13 = arith.constant 0 : index
      %23 = vector.load %arg7[%c0_12, %c0_13] : memref<8x128xf32, #tpu.memory_space<vmem>>, vector<8x128xf32>
      %24 = vector.shape_cast %9 : vector<16x128xf32> to vector<2x8x128xf32>
      %cst = arith.constant dense<0.000000e+00> : vector<8x128xf32>
      %25 = vector.multi_reduction <add>, %24, %cst [0] : vector<2x8x128xf32> to vector<8x128xf32>
      %26 = arith.addf %23, %25 : vector<8x128xf32>
      %c0_14 = arith.constant 0 : index
      %c0_15 = arith.constant 0 : index
      %27 = vector.load %arg7[%c0_14, %c0_15] : memref<8x128xf32, #tpu.memory_space<vmem>>, vector<8x128xf32>
      tpu.vector_store %arg7[%c0_14, %c0_15], %26 {strides = array<i32>} : memref<8x128xf32, #tpu.memory_space<vmem>>, vector<8x128xf32>,
      %c0_16 = arith.constant 0 : index
      %c0_17 = arith.constant 0 : index
      %28 = vector.load %arg8[%c0_16, %c0_17] : memref<8x128xf32, #tpu.memory_space<vmem>>, vector<8x128xf32>
      %29 = vector.shape_cast %6 : vector<16x128xf32> to vector<2x8x128xf32>
      %cst_18 = arith.constant dense<0.000000e+00> : vector<8x128xf32>
      %30 = vector.multi_reduction <add>, %29, %cst_18 [0] : vector<2x8x128xf32> to vector<8x128xf32>
      %31 = arith.addf %28, %30 : vector<8x128xf32>
      %c0_19 = arith.constant 0 : index
      %c0_20 = arith.constant 0 : index
      %32 = vector.load %arg8[%c0_19, %c0_20] : memref<8x128xf32, #tpu.memory_space<vmem>>, vector<8x128xf32>
      tpu.vector_store %arg8[%c0_19, %c0_20], %31 {strides = array<i32>} : memref<8x128xf32, #tpu.memory_space<vmem>>, vector<8x128xf32>,
    } else {
    }
    %18 = arith.extui %14 : i1 to i32
    %c0_i32_9 = arith.constant 0 : i32
    %19 = arith.cmpi ne, %18, %c0_i32_9 : i32
    scf.if %19 {
      %c16_i32_12 = arith.constant 16 : i32
      %23 = arith.muli %11, %c16_i32_12 : i32
      %24 = tpu.iota {dimensions = array<i32: 0>} : vector<16x128xi32>
      %25 = vector.broadcast %23 : i32 to vector<16x128xi32>
      %26 = arith.addi %25, %24 : vector<16x128xi32>
      %c16_i32_13 = arith.constant 16 : i32
      %27 = vector.broadcast %c16_i32_13 : i32 to vector<16x128xi32>
      %28 = arith.cmpi slt, %26, %27 : vector<16x128xi32>
      %cst = arith.constant 0.000000e+00 : f32
      %29 = vector.broadcast %cst : f32 to vector<16x128xf32>
      %30 = arith.select %28, %9, %29 : vector<16x128xi1>, vector<16x128xf32>
      %cst_14 = arith.constant 0.000000e+00 : f32
      %31 = vector.broadcast %cst_14 : f32 to vector<16x128xf32>
      %32 = arith.select %28, %6, %31 : vector<16x128xi1>, vector<16x128xf32>
      %c0_15 = arith.constant 0 : index
      %c0_16 = arith.constant 0 : index
      %33 = vector.load %arg7[%c0_15, %c0_16] : memref<8x128xf32, #tpu.memory_space<vmem>>, vector<8x128xf32>
      %34 = vector.shape_cast %30 : vector<16x128xf32> to vector<2x8x128xf32>
      %cst_17 = arith.constant dense<0.000000e+00> : vector<8x128xf32>
      %35 = vector.multi_reduction <add>, %34, %cst_17 [0] : vector<2x8x128xf32> to vector<8x128xf32>
      %36 = arith.addf %33, %35 : vector<8x128xf32>
      %c0_18 = arith.constant 0 : index
      %c0_19 = arith.constant 0 : index
      %37 = vector.load %arg7[%c0_18, %c0_19] : memref<8x128xf32, #tpu.memory_space<vmem>>, vector<8x128xf32>
      tpu.vector_store %arg7[%c0_18, %c0_19], %36 {strides = array<i32>} : memref<8x128xf32, #tpu.memory_space<vmem>>, vector<8x128xf32>,
      %c0_20 = arith.constant 0 : index
      %c0_21 = arith.constant 0 : index
      %38 = vector.load %arg8[%c0_20, %c0_21] : memref<8x128xf32, #tpu.memory_space<vmem>>, vector<8x128xf32>
      %39 = vector.shape_cast %32 : vector<16x128xf32> to vector<2x8x128xf32>
      %cst_22 = arith.constant dense<0.000000e+00> : vector<8x128xf32>
      %40 = vector.multi_reduction <add>, %39, %cst_22 [0] : vector<2x8x128xf32> to vector<8x128xf32>
      %41 = arith.addf %38, %40 : vector<8x128xf32>
      %c0_23 = arith.constant 0 : index
      %c0_24 = arith.constant 0 : index
      %42 = vector.load %arg8[%c0_23, %c0_24] : memref<8x128xf32, #tpu.memory_space<vmem>>, vector<8x128xf32>
      tpu.vector_store %arg8[%c0_23, %c0_24], %41 {strides = array<i32>} : memref<8x128xf32, #tpu.memory_space<vmem>>, vector<8x128xf32>,
    } else {
    }
    %c0_i32_10 = arith.constant 0 : i32
    %20 = arith.cmpi eq, %arg1, %c0_i32_10 : i32
    %21 = arith.extui %20 : i1 to i32
    %c0_i32_11 = arith.constant 0 : i32
    %22 = arith.cmpi ne, %21, %c0_i32_11 : i32
    scf.if %22 {
      %c0_12 = arith.constant 0 : index
      %c0_13 = arith.constant 0 : index
      %23 = vector.load %arg7[%c0_12, %c0_13] : memref<8x128xf32, #tpu.memory_space<vmem>>, vector<8x128xf32>
      %c0_14 = arith.constant 0 : index
      %c0_15 = arith.constant 0 : index
      %24 = vector.load %arg5[%c0_14, %c0_15] : memref<8x128xf32, #tpu.memory_space<vmem>>, vector<8x128xf32>
      tpu.vector_store %arg5[%c0_14, %c0_15], %23 {strides = array<i32>} : memref<8x128xf32, #tpu.memory_space<vmem>>, vector<8x128xf32>,
      %c0_16 = arith.constant 0 : index
      %c0_17 = arith.constant 0 : index
      %25 = vector.load %arg8[%c0_16, %c0_17] : memref<8x128xf32, #tpu.memory_space<vmem>>, vector<8x128xf32>
      %c0_18 = arith.constant 0 : index
      %c0_19 = arith.constant 0 : index
      %26 = vector.load %arg6[%c0_18, %c0_19] : memref<8x128xf32, #tpu.memory_space<vmem>>, vector<8x128xf32>
      tpu.vector_store %arg6[%c0_18, %c0_19], %25 {strides = array<i32>} : memref<8x128xf32, #tpu.memory_space<vmem>>, vector<8x128xf32>,
    } else {
    }
    return
  }
  func.func @transform_0(%arg0: i32, %arg1: i32) -> (i32, i32) {
    %c1_i32 = arith.constant 1 : i32
    %0 = arith.muli %arg0, %c1_i32 : i32
    %1 = arith.addi %0, %arg1 : i32
    %c0_i32 = arith.constant 0 : i32
    %2 = arith.minsi %1, %c0_i32 : i32
    %c0_i32_0 = arith.constant 0 : i32
    %c0_i32_1 = arith.constant 0 : i32
    return %2, %c0_i32_0 : i32, i32
  }
  func.func @transform_1(%arg0: i32, %arg1: i32) -> (i32, i32) {
    %c1_i32 = arith.constant 1 : i32
    %0 = arith.muli %arg0, %c1_i32 : i32
    %1 = arith.addi %0, %arg1 : i32
    %c0_i32 = arith.constant 0 : i32
    %2 = arith.minsi %1, %c0_i32 : i32
    %c0_i32_0 = arith.constant 0 : i32
    %c0_i32_1 = arith.constant 0 : i32
    return %2, %c0_i32_0 : i32, i32
  }
  func.func @transform_2(%arg0: i32, %arg1: i32) -> (i32, i32) {
    %c1_i32 = arith.constant 1 : i32
    %0 = arith.muli %arg0, %c1_i32 : i32
    %1 = arith.addi %0, %arg1 : i32
    %c0_i32 = arith.constant 0 : i32
    %2 = arith.minsi %1, %c0_i32 : i32
    %c0_i32_0 = arith.constant 0 : i32
    %c0_i32_1 = arith.constant 0 : i32
    return %2, %c0_i32_0 : i32, i32
  }
  func.func @transform_3(%arg0: i32, %arg1: i32) -> (i32, i32) {
    %c0_i32 = arith.constant 0 : i32
    %c0_i32_0 = arith.constant 0 : i32
    return %arg0, %c0_i32 : i32, i32
  }
  func.func @transform_4(%arg0: i32, %arg1: i32) -> (i32, i32) {
    %c0_i32 = arith.constant 0 : i32
    %c0_i32_0 = arith.constant 0 : i32
    return %arg0, %c0_i32 : i32, i32
  }
}

</mosaic_0001>

<llo_original>
// kernel: tpu_custom_call.1
$region0: #{tpu_custom_call.1}
  #allocation0 [shape = 'u32[]', space=smem, size = 0x4, offset = 0x4, fixed_abs, tag = 'smem constant byte address 0x4 - core index']
  #allocation1 [shape = 'u32[144,128]{1,0:T(1,128)}', space=vmem, size = 0x12000, scoped, tag = 'internal scratch']
  #allocation2 [shape = 'f32[8,128]{1,0:T(8,128)}', space=vmem, size = 0x1000, scoped, tag = 'scratch operand']
  #allocation3 [shape = 'f32[8,128]{1,0:T(8,128)}', space=vmem, size = 0x1000, scoped, tag = 'scratch operand']
  %s0 = inlined_call_operand.hbm [shape: f32[16,128], index: 0, kind: input, shape index: {}]
  %s1 = inlined_call_operand.hbm [shape: f32[16,128], index: 1, kind: input, shape index: {}]
  %s2 = inlined_call_operand.hbm [shape: s8[16,128], index: 2, kind: input, shape index: {}]
  %s3 = inlined_call_operand.hbm [shape: f32[8,128], index: 3, kind: output, shape index: {0}]
  %s4 = inlined_call_operand.hbm [shape: f32[8,128], index: 4, kind: output, shape index: {1}]
  %5 = xla_tuple %s3, %s4
  %s6 = sld [smem:[#allocation0]]
  $region58: #{tpu_custom_call.1} parent=0
    _
  %s8 = ssub.s32 1, %s6
  %s9 = scalar_select 0, %s8, %s6
  $region1: #{tpu_custom_call.1} parent=0
    #allocation4 [shape = 'u8[8192]{0}', space=vmem, size = 0x2000, scoped, tag = 'input window, operand 0, single buffered']
    #allocation5 [shape = 's32[1]{0}', space=sflag, size = 0x4, scoped, tag = 'scoped memory for tpu_custom_call.1']
    #allocation6 [shape = 's32[1]{0}', space=sflag, size = 0x4, scoped, tag = 'scoped memory for tpu_custom_call.1']
    #allocation7 [shape = 'u8[8192]{0}', space=vmem, size = 0x2000, scoped, tag = 'input window, operand 1, single buffered']
    #allocation8 [shape = 's32[1]{0}', space=sflag, size = 0x4, scoped, tag = 'scoped memory for tpu_custom_call.1']
    #allocation9 [shape = 'u8[2048]{0}', space=vmem, size = 0x800, scoped, tag = 'input window, operand 2, single buffered']
    #allocation10 [shape = 'u8[4096]{0}', space=vmem, size = 0x1000, scoped, tag = 'output window, operand 0, single buffered']
    #allocation11 [shape = 'u8[4096]{0}', space=vmem, size = 0x1000, scoped, tag = 'output window, operand 1, single buffered']
    #allocation12 [shape = 's32[1]{0}', space=sflag, size = 0x4, scoped, tag = 'scoped memory for tpu_custom_call.1']
    %10 = vsyncpa [#allocation5], 0
    %11 = vsyncpa [#allocation8], 0
    %12 = vsyncpa [#allocation6], 0
    %13 = vsyncpa [#allocation12], 0
    // Predicated region
    $region2: #{tpu_custom_call.1} parent=1 // pred_check
      _
    $region3: #{tpu_custom_call.1} parent=1 // pred_check_branch
      %15 = sbr.rel (0) target = $region5
    $region4: #{tpu_custom_call.1} parent=1 // pred_region
      %s16 = sadd.s32 0, 0
      %p17 = scmp.lt.s32.totalorder %s16, 0
      %s18 = scalar_select %p17, %s16, 0
      %s19 = smul.u32 2, %s18
      %s21 = ssub.s32 256, 256
      %22 = vsyncadd [#allocation5], %s21
      %s23 = smul.addr %s19, 128
      %s24 = scalar_lea.hbm %s0, %s23
      %s25 = sshll.u32 [#allocation4], 4
      %s26 = int_to_ptr.vmem [resolvable:$true] %s25
      %31 = dma.hbm_to_vmem [thread:$0]  %s24, 256, %s26, [#allocation5], 128, 128, 8
    $region5: #{tpu_custom_call.1} parent=1 // pred_fallthru
      _
    // Predicated region
    $region6: #{tpu_custom_call.1} parent=1 // pred_check
      _
    $region7: #{tpu_custom_call.1} parent=1 // pred_check_branch
      %33 = sbr.rel (0) target = $region9
    $region8: #{tpu_custom_call.1} parent=1 // pred_region
      %s34 = sadd.s32 0, 0
      %p35 = scmp.lt.s32.totalorder %s34, 0
      %s36 = scalar_select %p35, %s34, 0
      %s37 = smul.u32 2, %s36
      %s39 = ssub.s32 256, 256
      %40 = vsyncadd [#allocation8], %s39
      %s41 = smul.addr %s37, 128
      %s42 = scalar_lea.hbm %s1, %s41
      %s43 = sshll.u32 [#allocation7], 4
      %s44 = int_to_ptr.vmem [resolvable:$true] %s43
      %49 = dma.hbm_to_vmem [thread:$0]  %s42, 256, %s44, [#allocation8], 128, 128, 8
    $region9: #{tpu_custom_call.1} parent=1 // pred_fallthru
      _
    // Predicated region
    $region10: #{tpu_custom_call.1} parent=1 // pred_check
      _
    $region11: #{tpu_custom_call.1} parent=1 // pred_check_branch
      %51 = sbr.rel (0) target = $region13
    $region12: #{tpu_custom_call.1} parent=1 // pred_region
      %s52 = sadd.s32 0, 0
      %p53 = scmp.lt.s32.totalorder %s52, 0
      %s54 = scalar_select %p53, %s52, 0
      %s55 = smul.u32 2, %s54
      %s57 = ssub.s32 64, 64
      %58 = vsyncadd [#allocation8], %s57
      %s59 = smul.addr %s55, 32
      %s60 = scalar_lea.hbm %s2, %s59
      %s61 = sshll.u32 [#allocation9], 4
      %s62 = int_to_ptr.vmem [resolvable:$true] %s61
      %67 = dma.hbm_to_vmem [thread:$0]  %s60, 64, %s62, [#allocation8], 32, 32, 2
    $region13: #{tpu_custom_call.1} parent=1 // pred_fallthru
      _
    // Predicated region
    $region14: #{tpu_custom_call.1} parent=1 // pred_check
      _
    $region15: #{tpu_custom_call.1} parent=1 // pred_check_branch
      %69 = sbr.rel (0) target = $region17
    $region16: #{tpu_custom_call.1} parent=1 // pred_region
      %70 = dma.done [#allocation5], 256
    $region17: #{tpu_custom_call.1} parent=1 // pred_fallthru
      _
    // Predicated region
    $region18: #{tpu_custom_call.1} parent=1 // pred_check
      _
    $region19: #{tpu_custom_call.1} parent=1 // pred_check_branch
      %72 = sbr.rel (0) target = $region21
    $region20: #{tpu_custom_call.1} parent=1 // pred_region
      %73 = dma.done [#allocation8], 256
    $region21: #{tpu_custom_call.1} parent=1 // pred_fallthru
      _
    // Predicated region
    $region22: #{tpu_custom_call.1} parent=1 // pred_check
      _
    $region23: #{tpu_custom_call.1} parent=1 // pred_check_branch
      %75 = sbr.rel (0) target = $region25
    $region24: #{tpu_custom_call.1} parent=1 // pred_region
      %76 = dma.done [#allocation8], 64
    $region25: #{tpu_custom_call.1} parent=1 // pred_fallthru
      _
    %s77 = sadd.s32 0, 0
    %p78 = scmp.lt.s32.totalorder %s77, 0
    %s79 = scalar_select %p78, %s77, 0
    %s80 = smul.u32 2, %s79
    %s81 = sadd.s32 0, 0
    %p82 = scmp.lt.s32.totalorder %s81, 0
    %s83 = scalar_select %p82, %s81, 0
    %s84 = smul.u32 2, %s83
    %s85 = sadd.s32 0, 0
    %p86 = scmp.lt.s32.totalorder %s85, 0
    %s87 = scalar_select %p86, %s85, 0
    %s88 = smul.u32 2, %s87
    %p89 = scmp.eq.s32.totalorder 0, 0
    // Predicated region
    $region26: #{tpu_custom_call.1} parent=1 // pred_check
      %p90 = pneg %p89
    $region27: #{tpu_custom_call.1} parent=1 // pred_check_branch
      %92 = sbr.rel (%p90) target = $region29
    $region28: #{tpu_custom_call.1} parent=1 // pred_region
      %93 = vst [vmem:[#allocation2] sm:$0xff] 0.0
      %94 = vst [vmem:[#allocation3] sm:$0xff] 0.0
    $region29: #{tpu_custom_call.1} parent=1 // pred_fallthru
      _
    %v95 = vld [vmem:[#allocation4] sm:$0xff]
    %v96 = vld [vmem:[#allocation4 + $0x8] sm:$0xff]
    %v97 = vld [vmem:[#allocation7] sm:$0xff]
    %v98 = vld [vmem:[#allocation7 + $0x8] sm:$0xff]
    %v99 = vld [vmem:[#allocation9] sm:$0x3]
    %v100 = vld [vmem:[#allocation9 + $0x2] sm:$0x3]
    %v101 = vunpack.c.0.s8 %v99
    %v102 = vunpack.c.0.s8 %v100
    %v103 = vcvt.s32.f32 %v101
    %v104 = vcvt.s32.f32 %v102
    %v105 = vsub.f32 %v95, %v97
    %v106 = vsub.f32 %v96, %v98
    %v107 = vmul.f32 %v105, %v105
    %v108 = vmul.f32 %v106, %v106
    %v109 = vmul.f32 %v107, %v103
    %v110 = vmul.f32 %v108, %v104
    %s111 = sadd.s32 0, 0
    %s112 = sadd.s32 %s111, 1
    %s113 = smul.u32 %s112, 16
    %p114 = scmp.gt.s32.totalorder %s113, 16
    %p115 = scmp.le.s32.totalorder %s113, 16
    // Predicated region
    $region30: #{tpu_custom_call.1} parent=1 // pred_check
      %p116 = pneg %p115
    $region31: #{tpu_custom_call.1} parent=1 // pred_check_branch
      %118 = sbr.rel (%p116) target = $region33
    $region32: #{tpu_custom_call.1} parent=1 // pred_region
      %v119 = vld [vmem:[#allocation2] sm:$0xff]
      %v120 = vadd.f32 %v109, %v110
      %v121 = vadd.f32 %v119, %v120
      %122 = vst [vmem:[#allocation2] sm:$0xff] %v121
      %v123 = vld [vmem:[#allocation3] sm:$0xff]
      %v124 = vadd.f32 %v103, %v104
      %v125 = vadd.f32 %v123, %v124
      %126 = vst [vmem:[#allocation3] sm:$0xff] %v125
    $region33: #{tpu_custom_call.1} parent=1 // pred_fallthru
      _
    // Predicated region
    $region34: #{tpu_custom_call.1} parent=1 // pred_check
      %p127 = pneg %p114
    $region35: #{tpu_custom_call.1} parent=1 // pred_check_branch
      %129 = sbr.rel (%p127) target = $region37
    $region36: #{tpu_custom_call.1} parent=1 // pred_region
      %s130 = smul.u32 %s111, 16
      %v131 = vlaneseq
      %v132 = vshrl.u32 %v131, 7
      %v133 = vadd.s32 %v132, 8
      %v134 = vstv %s130
      %v135 = vadd.s32 %v134, %v132
      %v136 = vadd.s32 %v134, %v133
      %vm137 = vcmp.lt.s32.totalorder %v135, 16
      %vm138 = vcmp.lt.s32.totalorder %v136, 16
      %v139 = vsel %vm137, %v109, 0.0
      %v140 = vsel %vm138, %v110, 0.0
      %v141 = vsel %vm137, %v103, 0.0
      %v142 = vsel %vm138, %v104, 0.0
      %v143 = vld [vmem:[#allocation2] sm:$0xff]
      %v144 = vadd.f32 %v139, %v140
      %v145 = vadd.f32 %v143, %v144
      %146 = vst [vmem:[#allocation2] sm:$0xff] %v145
      %v147 = vld [vmem:[#allocation3] sm:$0xff]
      %v148 = vadd.f32 %v141, %v142
      %v149 = vadd.f32 %v147, %v148
      %150 = vst [vmem:[#allocation3] sm:$0xff] %v149
    $region37: #{tpu_custom_call.1} parent=1 // pred_fallthru
      _
    // Predicated region
    $region38: #{tpu_custom_call.1} parent=1 // pred_check
      %p151 = pneg %p89
    $region39: #{tpu_custom_call.1} parent=1 // pred_check_branch
      %153 = sbr.rel (%p151) target = $region41
    $region40: #{tpu_custom_call.1} parent=1 // pred_region
      %v154 = vld [vmem:[#allocation2] sm:$0xff]
      %155 = vst [vmem:[#allocation10] sm:$0xff] %v154
      %v156 = vld [vmem:[#allocation3] sm:$0xff]
      %157 = vst [vmem:[#allocation11] sm:$0xff] %v156
    $region41: #{tpu_custom_call.1} parent=1 // pred_fallthru
      _
    // Predicated region
    $region42: #{tpu_custom_call.1} parent=1 // pred_check
      _
    $region43: #{tpu_custom_call.1} parent=1 // pred_check_branch
      %159 = sbr.rel (0) target = $region45
    $region44: #{tpu_custom_call.1} parent=1 // pred_region
      %s161 = ssub.s32 128, 128
      %162 = vsyncadd [#allocation6], %s161
      %s164 = sshll.u32 [#allocation10], 4
      %s165 = int_to_ptr.vmem [resolvable:$true] %s164
      %167 = dma.vmem_to_hbm [thread:$0]  %s165, 128, %s3, [#allocation6]
    $region45: #{tpu_custom_call.1} parent=1 // pred_fallthru
      _
    // Predicated region
    $region46: #{tpu_custom_call.1} parent=1 // pred_check
      _
    $region47: #{tpu_custom_call.1} parent=1 // pred_check_branch
      %169 = sbr.rel (0) target = $region49
    $region48: #{tpu_custom_call.1} parent=1 // pred_region
      %s171 = ssub.s32 128, 128
      %172 = vsyncadd [#allocation12], %s171
      %s174 = sshll.u32 [#allocation11], 4
      %s175 = int_to_ptr.vmem [resolvable:$true] %s174
      %177 = dma.vmem_to_hbm [thread:$0]  %s175, 128, %s4, [#allocation12]
    $region49: #{tpu_custom_call.1} parent=1 // pred_fallthru
      _
    // Predicated region
    $region50: #{tpu_custom_call.1} parent=1 // pred_check
      _
    $region51: #{tpu_custom_call.1} parent=1 // pred_check_branch
      %179 = sbr.rel (0) target = $region53
    $region52: #{tpu_custom_call.1} parent=1 // pred_region
      %180 = dma.done [#allocation6], 128
    $region53: #{tpu_custom_call.1} parent=1 // pred_fallthru
      _
    // Predicated region
    $region54: #{tpu_custom_call.1} parent=1 // pred_check
      _
    $region55: #{tpu_custom_call.1} parent=1 // pred_check_branch
      %182 = sbr.rel (0) target = $region57
    $region56: #{tpu_custom_call.1} parent=1 // pred_region
      %183 = dma.done [#allocation12], 128
    $region57: #{tpu_custom_call.1} parent=1 // pred_fallthru
      _
    %184 = vsyncpa [#allocation5], 1
    %185 = vsyncpa [#allocation8], 1
    %186 = vsyncpa [#allocation6], 1
    %187 = vsyncpa [#allocation12], 1

</llo_original>
